<compile_context>
chip_gen: v6e
topology: v6e:2x2x1
jax: 0.10.0
libtpu: 0.0.40
codegen_flags: <defaults>
</compile_context>

<pallas_src>
import jax
import jax.numpy as jnp
from jax.experimental import pallas as pl
from jax.experimental.pallas import tpu as pltpu
from functools import partial


_LANE = 128
_FAST_PATH_MAX_BYTES = 256 * 1024   # below this, fused XLA beats a pallas_call launch
_MIN_SPLIT_BYTES = 1 * 1024 * 1024  # above this, insist on >= 2 grid steps (v7x 2 TCs)


def _round_up(x, m):
    return ((x + m - 1) // m) * m


def _vmem_budget():
    """(per-block byte budget for the native-dtype tile, scoped vmem limit)."""
    try:
        cap = pltpu.get_tpu_info().vmem_capacity_bytes
    except Exception:
        cap = None
    if cap is not None and cap >= 100 * 1024 * 1024:
        # v5e / v6e class: 128 MiB physical VMEM -> bigger tiles, fewer grid steps.
        return 4 * 1024 * 1024, 64 * 1024 * 1024
    # v7x class (64 MiB per TC) or unknown: stay spill-safe.
    return 2 * 1024 * 1024, 48 * 1024 * 1024


# ---------------------------------------------------------------------------
# Kernels
# ---------------------------------------------------------------------------
def _layernorm_kernel(x_ref, gamma_ref, beta_ref, o_ref, *, eps):
    # x block: (TB, C, TS); gamma/beta block: (C, 1). Reduction over C (axis 1).
    x = x_ref[...].astype(jnp.float32)                   # (TB, C, TS)
    mean = jnp.mean(x, axis=1, keepdims=True)            # (TB, 1, TS)
    xc = x - mean                                        # reused for var + normalize
    var = jnp.mean(xc * xc, axis=1, keepdims=True)       # (TB, 1, TS)
    xn = xc * jax.lax.rsqrt(var + eps)                   # (TB, C, TS)
    g = gamma_ref[...][None]                             # (1, C, 1)
    b = beta_ref[...][None]                              # (1, C, 1)
    o_ref[...] = (xn * g + b).astype(o_ref.dtype)


def _layernorm_rows_kernel(x_ref, gamma_ref, beta_ref, o_ref, *, eps):
    # 2-D input: x block (TB, C), C on lanes; reduction over lanes.
    x = x_ref[...].astype(jnp.float32)                   # (TB, C)
    mean = jnp.mean(x, axis=1, keepdims=True)            # (TB, 1)
    xc = x - mean
    var = jnp.mean(xc * xc, axis=1, keepdims=True)
    xn = xc * jax.lax.rsqrt(var + eps)
    o_ref[...] = (xn * gamma_ref[...] + beta_ref[...]).astype(o_ref.dtype)


# ---------------------------------------------------------------------------
# Wrappers
# ---------------------------------------------------------------------------
def _layer_norm_nd(x, gamma, beta, eps, block_budget_bytes, vmem_limit_bytes):
    orig_shape = x.shape
    B, C = orig_shape[0], orig_shape[1]
    S = 1
    for d in orig_shape[2:]:
        S *= d
    itemsize = jnp.dtype(x.dtype).itemsize

    # Merging the trailing dims of a contiguous array is metadata-only (no HBM pass).
    x3 = x.reshape(B, C, S)

    per_batch_bytes = C * S * itemsize
    if per_batch_bytes <= block_budget_bytes:
        # Whole S per block (block dim == full dim satisfies the (8,128) rule);
        # pack multiple batches per grid step to amortize per-step overhead.
        TS = S
        TB = min(B, max(1, block_budget_bytes // per_batch_bytes))
    else:
        # One batch per block; tile S in multiples of 128 lanes (ragged last block).
        TB = 1
        lanes = max(1, block_budget_bytes // (C * itemsize * _LANE))
        TS = lanes * _LANE

    # v7x has 2 TensorCores: make sure non-tiny inputs produce >= 2 parallel steps.
    if (pl.cdiv(B, TB) * pl.cdiv(S, TS) == 1
            and B * per_batch_bytes > _MIN_SPLIT_BYTES):
        if B > 1:
            TB = pl.cdiv(B, 2)
        elif S >= 2 * _LANE:
            TS = _round_up(pl.cdiv(S, 2), _LANE)

    grid = (pl.cdiv(B, TB), pl.cdiv(S, TS))

    gamma2 = gamma.reshape(C, 1).astype(jnp.float32)
    beta2 = beta.reshape(C, 1).astype(jnp.float32)

    out = pl.pallas_call(
        partial(_layernorm_kernel, eps=eps),
        out_shape=jax.ShapeDtypeStruct((B, C, S), x.dtype),
        grid_spec=pltpu.PrefetchScalarGridSpec(
            num_scalar_prefetch=0,
            grid=grid,
            in_specs=[
                pl.BlockSpec((TB, C, TS), lambda b, s: (b, 0, s)),
                pl.BlockSpec((C, 1), lambda b, s: (0, 0)),
                pl.BlockSpec((C, 1), lambda b, s: (0, 0)),
            ],
            out_specs=pl.BlockSpec((TB, C, TS), lambda b, s: (b, 0, s)),
        ),
        compiler_params=pltpu.CompilerParams(
            dimension_semantics=("parallel", "parallel"),
            vmem_limit_bytes=vmem_limit_bytes,
        ),
        cost_estimate=pl.CostEstimate(
            flops=8 * B * C * S,
            transcendentals=B * S,
            bytes_accessed=2 * B * C * S * itemsize,
        ),
    )(x3, gamma2, beta2)

    return out.reshape(orig_shape)


def _layer_norm_2d(x, gamma, beta, eps, block_budget_bytes, vmem_limit_bytes):
    B, C = x.shape
    itemsize = jnp.dtype(x.dtype).itemsize
    gamma2 = gamma.reshape(1, C).astype(jnp.float32)
    beta2 = beta.reshape(1, C).astype(jnp.float32)

    if B * C * itemsize <= block_budget_bytes:
        TB = B                                   # block == full dim
    else:
        TB = max(8, (block_budget_bytes // (C * itemsize)) // 8 * 8)

    # Keep both v7x TensorCores busy for non-tiny inputs.
    if pl.cdiv(B, TB) == 1 and B * C * itemsize > _MIN_SPLIT_BYTES and B > 8:
        TB = _round_up(pl.cdiv(B, 2), 8)

    grid = (pl.cdiv(B, TB),)

    out = pl.pallas_call(
        partial(_layernorm_rows_kernel, eps=eps),
        out_shape=jax.ShapeDtypeStruct((B, C), x.dtype),
        grid_spec=pltpu.PrefetchScalarGridSpec(
            num_scalar_prefetch=0,
            grid=grid,
            in_specs=[
                pl.BlockSpec((TB, C), lambda i: (i, 0)),
                pl.BlockSpec((1, C), lambda i: (0, 0)),
                pl.BlockSpec((1, C), lambda i: (0, 0)),
            ],
            out_specs=pl.BlockSpec((TB, C), lambda i: (i, 0)),
        ),
        compiler_params=pltpu.CompilerParams(
            dimension_semantics=("parallel",),
            vmem_limit_bytes=vmem_limit_bytes,
        ),
        cost_estimate=pl.CostEstimate(
            flops=8 * B * C,
            transcendentals=B,
            bytes_accessed=2 * B * C * itemsize,
        ),
    )(x, gamma2, beta2)
    return out


def _layer_norm_fused(x, gamma, beta, eps):
    """Fused pure-JAX path for tiny inputs (launch overhead dominates Pallas)."""
    n_dims = x.ndim
    mean = jnp.mean(x, axis=1, keepdims=True)
    var = jnp.mean(jnp.square(x - mean), axis=1, keepdims=True)
    xn = (x - mean) * jax.lax.rsqrt(var + eps)
    shape = [1, -1] + [1] * (n_dims - 2)
    return xn * gamma.reshape(shape) + beta.reshape(shape)


def layer_norm(x, gamma, beta, eps=1e-4, *, force_pallas=False,
               block_budget_bytes=None, vmem_limit_bytes=None):
    """LayerNorm over channel dim (axis 1) of an N-D input [B, C, ...]."""
    total_bytes = x.size * jnp.dtype(x.dtype).itemsize
    if not force_pallas and total_bytes <= _FAST_PATH_MAX_BYTES:
        return _layer_norm_fused(x, gamma, beta, eps)

    bb, vl = _vmem_budget()
    if block_budget_bytes is None:
        block_budget_bytes = bb
    if vmem_limit_bytes is None:
        vmem_limit_bytes = vl

    if x.ndim == 2:
        return _layer_norm_2d(x, gamma, beta, eps, block_budget_bytes,
                              vmem_limit_bytes)
    return _layer_norm_nd(x, gamma, beta, eps, block_budget_bytes,
                          vmem_limit_bytes)


def layer_norm_ref(x, gamma, beta, eps=1e-4):
    """Pure-JAX reference matching the PyTorch module semantics."""
    return _layer_norm_fused(x, gamma, beta, eps)


if __name__ == "__main__":
    key = jax.random.PRNGKey(0)

    # Parameters matching nn.Parameter(torch.ones/zeros(channels)).
    C = 4
    gamma = jnp.ones((C,), dtype=jnp.float32)
    beta = jnp.zeros((C,), dtype=jnp.float32)

    # --- main NCHW case (benchmark shape) ---
    B, H, W = 2, 4, 16  # B=2, C=4, spatial 16x16
    x = jax.random.normal(key, (2, C, 16, 16), dtype=jnp.float32)
    y_ref = layer_norm_ref(x, gamma, beta, eps=1e-4)
    # Default dispatch (tiny input -> fused fast path).
    y_fast = jax.block_until_ready(layer_norm(x, gamma, beta, eps=1e-4))
    assert jnp.allclose(y_fast, y_ref, atol=1e-5, rtol=1e-5)
    # Same shape through the Pallas kernel itself.
    y = jax.block_until_ready(layer_norm(x, gamma, beta, eps=1e-4,
                                         force_pallas=True))
    assert y.shape == x.shape
    assert jnp.allclose(y, y_ref, atol=1e-5, rtol=1e-5)

    # --- spatial size not a multiple of 128 (whole-S block == full dim) ---
    x2 = jax.random.normal(jax.random.PRNGKey(1), (2, C, 5, 7), dtype=jnp.float32)
    y2 = jax.block_until_ready(layer_norm(x2, gamma, beta, eps=1e-4,
                                          force_pallas=True))
    assert jnp.allclose(y2, layer_norm_ref(x2, gamma, beta, eps=1e-4),
                        atol=1e-5, rtol=1e-5)

    # --- tiled-S path with a ragged last lane block (no wrapper pad/slice) ---
    x3 = jax.random.normal(jax.random.PRNGKey(2), (2, C, 16, 17), dtype=jnp.float32)
    y3 = jax.block_until_ready(layer_norm(x3, gamma, beta, eps=1e-4,
                                          force_pallas=True,
                                          block_budget_bytes=2048))
    assert jnp.allclose(y3, layer_norm_ref(x3, gamma, beta, eps=1e-4),
                        atol=1e-5, rtol=1e-5)

    # --- ragged batch block (TB=2 over B=3, cdiv grid) ---
    x4 = jax.random.normal(jax.random.PRNGKey(3), (3, C, 16, 16), dtype=jnp.float32)
    y4 = jax.block_until_ready(layer_norm(x4, gamma, beta, eps=1e-4,
                                          force_pallas=True,
                                          block_budget_bytes=8192))
    assert jnp.allclose(y4, layer_norm_ref(x4, gamma, beta, eps=1e-4),
                        atol=1e-5, rtol=1e-5)

    # --- bf16 input (dtype-aware block sizing, f32 compute inside) ---
    x5 = jax.random.normal(jax.random.PRNGKey(4), (2, C, 16, 16),
                           dtype=jnp.bfloat16)
    y5 = jax.block_until_ready(layer_norm(x5, gamma, beta, eps=1e-4,
                                          force_pallas=True))
    assert jnp.allclose(y5.astype(jnp.float32),
                        layer_norm_ref(x5.astype(jnp.float32), gamma, beta,
                                       eps=1e-4),
                        atol=2e-2, rtol=2e-2)

    # --- 2-D input path (B on sublanes, C on lanes), plus ragged B blocks ---
    C2 = 32
    g2 = jnp.ones((C2,), dtype=jnp.float32)
    b2 = jnp.zeros((C2,), dtype=jnp.float32)
    x6 = jax.random.normal(jax.random.PRNGKey(5), (8, C2), dtype=jnp.float32)
    y6 = jax.block_until_ready(layer_norm(x6, g2, b2, eps=1e-4,
                                          force_pallas=True))
    assert jnp.allclose(y6, layer_norm_ref(x6, g2, b2, eps=1e-4),
                        atol=1e-5, rtol=1e-5)
    x7 = jax.random.normal(jax.random.PRNGKey(6), (20, C2), dtype=jnp.float32)
    y7 = jax.block_until_ready(layer_norm(x7, g2, b2, eps=1e-4,
                                          force_pallas=True,
                                          block_budget_bytes=1024))
    assert jnp.allclose(y7, layer_norm_ref(x7, g2, b2, eps=1e-4),
                        atol=1e-5, rtol=1e-5)

    print("KERNEL_OK")
</pallas_src>

<mosaic_0001>
module attributes {stable_mosaic.version = 11 : i64} {
  func.func @_layernorm_kernel(%arg0: i32, %arg1: i32, %arg2: memref<2x4x256xf32, #tpu.memory_space<vmem>>, %arg3: memref<4x1xf32, #tpu.memory_space<vmem>>, %arg4: memref<4x1xf32, #tpu.memory_space<vmem>>, %arg5: memref<2x4x256xf32, #tpu.memory_space<vmem>>) attributes {dimension_semantics = [#tpu.dimension_semantics<parallel>, #tpu.dimension_semantics<parallel>], iteration_bounds = array<i64: 1, 1>, scalar_prefetch = 0 : i64, scratch_operands = 0 : i64, tpu.core_type = #tpu.core_type<tc>, window_params = [{transform_indices = @transform_0, window_bounds = array<i64: 2, 4, 256>}, {pipeline_mode = #tpu.pipeline_mode<synchronous>, transform_indices = @transform_1, window_bounds = array<i64: 4, 1>}, {pipeline_mode = #tpu.pipeline_mode<synchronous>, transform_indices = @transform_2, window_bounds = array<i64: 4, 1>}, {transform_indices = @transform_3, window_bounds = array<i64: 2, 4, 256>}]} {
    %c0 = arith.constant 0 : index
    %c0_0 = arith.constant 0 : index
    %c0_1 = arith.constant 0 : index
    %0 = vector.load %arg2[%c0, %c0_0, %c0_1] : memref<2x4x256xf32, #tpu.memory_space<vmem>>, vector<2x4x256xf32>
    %cst = arith.constant dense<0.000000e+00> : vector<2x256xf32>
    %1 = vector.multi_reduction <add>, %0, %cst [1] : vector<2x4x256xf32> to vector<2x256xf32>
    %2 = vector.shape_cast %1 : vector<2x256xf32> to vector<2x1x256xf32>
    %cst_2 = arith.constant 4.000000e+00 : f32
    %3 = vector.broadcast %cst_2 : f32 to vector<2x1x256xf32>
    %4 = arith.divf %2, %3 : vector<2x1x256xf32>
    %5 = vector.broadcast %4 : vector<2x1x256xf32> to vector<2x4x256xf32>
    %6 = arith.subf %0, %5 : vector<2x4x256xf32>
    %7 = arith.mulf %6, %6 : vector<2x4x256xf32>
    %cst_3 = arith.constant dense<0.000000e+00> : vector<2x256xf32>
    %8 = vector.multi_reduction <add>, %7, %cst_3 [1] : vector<2x4x256xf32> to vector<2x256xf32>
    %9 = vector.shape_cast %8 : vector<2x256xf32> to vector<2x1x256xf32>
    %cst_4 = arith.constant 4.000000e+00 : f32
    %10 = vector.broadcast %cst_4 : f32 to vector<2x1x256xf32>
    %11 = arith.divf %9, %10 : vector<2x1x256xf32>
    %cst_5 = arith.constant 9.99999974E-5 : f32
    %12 = vector.broadcast %cst_5 : f32 to vector<2x1x256xf32>
    %13 = arith.addf %11, %12 : vector<2x1x256xf32>
    %14 = math.rsqrt %13 : vector<2x1x256xf32>
    %15 = vector.broadcast %14 : vector<2x1x256xf32> to vector<2x4x256xf32>
    %16 = arith.mulf %6, %15 : vector<2x4x256xf32>
    %c0_6 = arith.constant 0 : index
    %c0_7 = arith.constant 0 : index
    %17 = vector.load %arg3[%c0_6, %c0_7] : memref<4x1xf32, #tpu.memory_space<vmem>>, vector<4x1xf32>
    %18 = vector.shape_cast %17 : vector<4x1xf32> to vector<1x4x1xf32>
    %c0_8 = arith.constant 0 : index
    %c0_9 = arith.constant 0 : index
    %19 = vector.load %arg4[%c0_8, %c0_9] : memref<4x1xf32, #tpu.memory_space<vmem>>, vector<4x1xf32>
    %20 = vector.shape_cast %19 : vector<4x1xf32> to vector<1x4x1xf32>
    %21 = vector.broadcast %18 : vector<1x4x1xf32> to vector<2x4x256xf32>
    %22 = arith.mulf %16, %21 : vector<2x4x256xf32>
    %23 = vector.broadcast %20 : vector<1x4x1xf32> to vector<2x4x256xf32>
    %24 = arith.addf %22, %23 : vector<2x4x256xf32>
    %c0_10 = arith.constant 0 : index
    %c0_11 = arith.constant 0 : index
    %c0_12 = arith.constant 0 : index
    %25 = vector.load %arg5[%c0_10, %c0_11, %c0_12] : memref<2x4x256xf32, #tpu.memory_space<vmem>>, vector<2x4x256xf32>
    tpu.vector_store %arg5[%c0_10, %c0_11, %c0_12], %24 {strides = array<i32>} : memref<2x4x256xf32, #tpu.memory_space<vmem>>, vector<2x4x256xf32>,
    return
  }
  func.func @transform_0(%arg0: i32, %arg1: i32) -> (i32, i32, i32) {
    %c0_i32 = arith.constant 0 : i32
    %c0_i32_0 = arith.constant 0 : i32
    return %arg0, %c0_i32, %arg1 : i32, i32, i32
  }
  func.func @transform_1(%arg0: i32, %arg1: i32) -> (i32, i32) {
    %c0_i32 = arith.constant 0 : i32
    %c0_i32_0 = arith.constant 0 : i32
    %c0_i32_1 = arith.constant 0 : i32
    return %c0_i32, %c0_i32_0 : i32, i32
  }
  func.func @transform_2(%arg0: i32, %arg1: i32) -> (i32, i32) {
    %c0_i32 = arith.constant 0 : i32
    %c0_i32_0 = arith.constant 0 : i32
    %c0_i32_1 = arith.constant 0 : i32
    return %c0_i32, %c0_i32_0 : i32, i32
  }
  func.func @transform_3(%arg0: i32, %arg1: i32) -> (i32, i32, i32) {
    %c0_i32 = arith.constant 0 : i32
    %c0_i32_0 = arith.constant 0 : i32
    return %arg0, %c0_i32, %arg1 : i32, i32, i32
  }
}

</mosaic_0001>

<llo_original>
// kernel: tpu_custom_call.1
$region0: #{tpu_custom_call.1}
  #allocation0 [shape = 'u32[]', space=smem, size = 0x4, offset = 0x4, fixed_abs, tag = 'smem constant byte address 0x4 - core index']
  #allocation1 [shape = 'u32[144,128]{1,0:T(1,128)}', space=vmem, size = 0x12000, scoped, tag = 'internal scratch']
  %s0 = inlined_call_operand.hbm [shape: f32[2,4,256], index: 0, kind: input, shape index: {}]
  %s1 = inlined_call_operand.vmem [shape: f32[4,1], index: 1, kind: input, shape index: {}]
  %s2 = inlined_call_operand.vmem [shape: f32[4,1], index: 2, kind: input, shape index: {}]
  %s3 = inlined_call_operand.hbm [shape: f32[2,4,256], index: 3, kind: output, shape index: {}]
  %s4 = sld [smem:[#allocation0]]
  $region26: #{tpu_custom_call.1} parent=0
    _
  %s6 = ssub.s32 1, %s4
  %s7 = scalar_select 0, %s6, %s4
  $region1: #{tpu_custom_call.1} parent=0
    #allocation2 [shape = 'u8[8192]{0}', space=vmem, size = 0x2000, scoped, tag = 'input window, operand 0, single buffered']
    #allocation3 [shape = 's32[1]{0}', space=sflag, size = 0x4, scoped, tag = 'scoped memory for tpu_custom_call.1']
    #allocation4 [shape = 's32[1]{0}', space=sflag, size = 0x4, scoped, tag = 'scoped memory for tpu_custom_call.1']
    #allocation5 [shape = 'u8[8192]{0}', space=vmem, size = 0x2000, scoped, tag = 'output window, operand 0, single buffered']
    %8 = vsyncpa [#allocation3], 0
    %9 = vsyncpa [#allocation4], 0
    // Predicated region
    $region2: #{tpu_custom_call.1} parent=1 // pred_check
      _
    $region3: #{tpu_custom_call.1} parent=1 // pred_check_branch
      %11 = sbr.rel (0) target = $region5
    $region4: #{tpu_custom_call.1} parent=1 // pred_region
      %s13 = ssub.s32 256, 256
      %14 = vsyncadd [#allocation3], %s13
      %s15 = sshll.u32 [#allocation2], 4
      %s16 = int_to_ptr.vmem [resolvable:$true] %s15
      %21 = dma.hbm_to_vmem [thread:$0]  %s0, 256, %s16, [#allocation3], 128, 128, 8
    $region5: #{tpu_custom_call.1} parent=1 // pred_fallthru
      _
    // Predicated region
    $region6: #{tpu_custom_call.1} parent=1 // pred_check
      _
    $region7: #{tpu_custom_call.1} parent=1 // pred_check_branch
      %23 = sbr.rel (0) target = $region9
    $region8: #{tpu_custom_call.1} parent=1 // pred_region
      _
    $region9: #{tpu_custom_call.1} parent=1 // pred_fallthru
      _
    // Predicated region
    $region10: #{tpu_custom_call.1} parent=1 // pred_check
      _
    $region11: #{tpu_custom_call.1} parent=1 // pred_check_branch
      %25 = sbr.rel (0) target = $region13
    $region12: #{tpu_custom_call.1} parent=1 // pred_region
      _
    $region13: #{tpu_custom_call.1} parent=1 // pred_fallthru
      _
    // Predicated region
    $region14: #{tpu_custom_call.1} parent=1 // pred_check
      _
    $region15: #{tpu_custom_call.1} parent=1 // pred_check_branch
      %27 = sbr.rel (0) target = $region17
    $region16: #{tpu_custom_call.1} parent=1 // pred_region
      %28 = dma.done [#allocation3], 256
    $region17: #{tpu_custom_call.1} parent=1 // pred_fallthru
      _
    %v29 = vld [vmem:[#allocation2] sm:$0xff]
    %v30 = vld [vmem:[#allocation2 + $0x8] sm:$0xff]
    %v33 = vcombine.high %v29, %v29
    %v34 = vcombine.high %v30, %v30
    %vm37 = vcmask 1043456
    %v38 = vsel %vm37, %v29, 0.0
    %v39 = vrot.slane %v38, 4
    %v40 = vadd.f32 %v38, %v39
    %v41 = vrot.slane %v40, 2
    %v42 = vadd.f32 %v40, %v41
    %v43 = vrot.slane %v42, 1
    %v44 = vadd.f32 %v42, %v43
    %v45 = vsel %vm37, %v33, 0.0
    %v46 = vrot.slane %v45, 4
    %v47 = vadd.f32 %v45, %v46
    %v48 = vrot.slane %v47, 2
    %v49 = vadd.f32 %v47, %v48
    %v50 = vrot.slane %v49, 1
    %v51 = vadd.f32 %v49, %v50
    %v52 = vsel %vm37, %v30, 0.0
    %v53 = vrot.slane %v52, 4
    %v54 = vadd.f32 %v52, %v53
    %v55 = vrot.slane %v54, 2
    %v56 = vadd.f32 %v54, %v55
    %v57 = vrot.slane %v56, 1
    %v58 = vadd.f32 %v56, %v57
    %v59 = vsel %vm37, %v34, 0.0
    %v60 = vrot.slane %v59, 4
    %v61 = vadd.f32 %v59, %v60
    %v62 = vrot.slane %v61, 2
    %v63 = vadd.f32 %v61, %v62
    %v64 = vrot.slane %v63, 1
    %v65 = vadd.f32 %v63, %v64
    %v66 = vrcp.pop 4.0
    %v67 = vmul.f32 %v44, %v66
    %v68 = vmul.f32 %v51, %v66
    %v69 = vmul.f32 %v58, %v66
    %v70 = vmul.f32 %v65, %v66
    %v75 = vcombine.low %v67, %v68
    %v76 = vcombine.low %v69, %v70
    %v79 = vsub.f32 %v29, %v75
    %v80 = vsub.f32 %v30, %v76
    %v81 = vmul.f32 %v79, %v79
    %v82 = vmul.f32 %v80, %v80
    %v85 = vcombine.high %v81, %v81
    %v86 = vcombine.high %v82, %v82
    %v89 = vsel %vm37, %v81, 0.0
    %v90 = vrot.slane %v89, 4
    %v91 = vadd.f32 %v89, %v90
    %v92 = vrot.slane %v91, 2
    %v93 = vadd.f32 %v91, %v92
    %v94 = vrot.slane %v93, 1
    %v95 = vadd.f32 %v93, %v94
    %v96 = vsel %vm37, %v85, 0.0
    %v97 = vrot.slane %v96, 4
    %v98 = vadd.f32 %v96, %v97
    %v99 = vrot.slane %v98, 2
    %v100 = vadd.f32 %v98, %v99
    %v101 = vrot.slane %v100, 1
    %v102 = vadd.f32 %v100, %v101
    %v103 = vsel %vm37, %v82, 0.0
    %v104 = vrot.slane %v103, 4
    %v105 = vadd.f32 %v103, %v104
    %v106 = vrot.slane %v105, 2
    %v107 = vadd.f32 %v105, %v106
    %v108 = vrot.slane %v107, 1
    %v109 = vadd.f32 %v107, %v108
    %v110 = vsel %vm37, %v86, 0.0
    %v111 = vrot.slane %v110, 4
    %v112 = vadd.f32 %v110, %v111
    %v113 = vrot.slane %v112, 2
    %v114 = vadd.f32 %v112, %v113
    %v115 = vrot.slane %v114, 1
    %v116 = vadd.f32 %v114, %v115
    %v117 = vmul.f32 %v95, %v66
    %v118 = vmul.f32 %v102, %v66
    %v119 = vmul.f32 %v109, %v66
    %v120 = vmul.f32 %v116, %v66
    %v121 = vadd.f32 %v117, 0.0001
    %v122 = vadd.f32 %v118, 0.0001
    %v123 = vadd.f32 %v119, 0.0001
    %v124 = vadd.f32 %v120, 0.0001
    %v125 = vrsqrt.pop %v121
    %v126 = vrsqrt.pop %v122
    %v127 = vrsqrt.pop %v123
    %v128 = vrsqrt.pop %v124
    %v133 = vcombine.low %v125, %v126
    %v134 = vcombine.low %v127, %v128
    %v137 = vmul.f32 %v79, %v133
    %v138 = vmul.f32 %v80, %v134
    %v139 = vld [vmem:[%s1] sm:$0xf]
    %v140 = vld [vmem:[%s2] sm:$0xf]
    %142 = vset.pattern.permute.xlu0 0
    %143 = vperm.xlu0 %142, %v139
    %v144 = vpop.permute.xlu0 %143
    %v146 = vunpack.c.l.s4 839922192
    %v147 = vunpack.c.0.s8 %v146
    %v148 = vlaneseq
    %v149 = vshrl.u32 %v148, 7
    %v150 = vsub.s32 %v147, %v149
    %v151 = vrot.slane %v144, %v150
    %v153 = vmul.f32 %v137, %v151
    %v154 = vmul.f32 %v138, %v151
    %156 = vset.pattern.permute.xlu0 0
    %157 = vperm.xlu0 %156, %v140
    %v158 = vpop.permute.xlu0 %157
    %v160 = vunpack.c.l.s4 839922192
    %v161 = vunpack.c.0.s8 %v160
    %v162 = vlaneseq
    %v163 = vshrl.u32 %v162, 7
    %v164 = vsub.s32 %v161, %v163
    %v165 = vrot.slane %v158, %v164
    %v167 = vadd.f32 %v153, %v165
    %v168 = vadd.f32 %v154, %v165
    %169 = vst [vmem:[#allocation5] sm:$0xff] %v167
    %170 = vst [vmem:[#allocation5 + $0x8] sm:$0xff] %v168
    // Predicated region
    $region18: #{tpu_custom_call.1} parent=1 // pred_check
      _
    $region19: #{tpu_custom_call.1} parent=1 // pred_check_branch
      %172 = sbr.rel (0) target = $region21
    $region20: #{tpu_custom_call.1} parent=1 // pred_region
      %s174 = ssub.s32 256, 256
      %175 = vsyncadd [#allocation4], %s174
      %s176 = sshll.u32 [#allocation5], 4
      %s177 = int_to_ptr.vmem [resolvable:$true] %s176
      %182 = dma.vmem_to_hbm [thread:$0]  %s177, 256, %s3, [#allocation4], 128, 128, 8
    $region21: #{tpu_custom_call.1} parent=1 // pred_fallthru
      _
    // Predicated region
    $region22: #{tpu_custom_call.1} parent=1 // pred_check
      _
    $region23: #{tpu_custom_call.1} parent=1 // pred_check_branch
      %184 = sbr.rel (0) target = $region25
    $region24: #{tpu_custom_call.1} parent=1 // pred_region
      %185 = dma.done [#allocation4], 256
    $region25: #{tpu_custom_call.1} parent=1 // pred_fallthru
      _
    %186 = vsyncpa [#allocation3], 1
    %187 = vsyncpa [#allocation4], 1

</llo_original>
